<compile_context>
chip_gen: v7x
topology: tpu7x:2x2x1
jax: 0.10.0
libtpu: 0.0.40
codegen_flags: <defaults>
</compile_context>

<pallas_src>
import math
import jax
import jax.numpy as jnp
from jax.experimental import pallas as pl
from jax.experimental.pallas import tpu as pltpu

DEFAULT_ROW_TILE = 2048   # packed rows (each packed row holds p original rows)


def _round_up(x, m):
    return ((x + m - 1) // m) * m


def _device_kind():
    try:
        return jax.devices()[0].device_kind.lower()
    except Exception:
        return ""


def _pick_lane_pad(hidden):
    """256-wide weight tiles on v6e/v7x (2x256^2 MXU), 128 elsewhere."""
    kind = _device_kind()
    wide_mxu = ("v6" in kind) or ("v7" in kind) or ("tpu7" in kind)
    base = 256 if wide_mxu else 128
    if base % hidden == 0:
        return base
    if 128 % hidden == 0:
        return 128
    # Fallback: no lane packing (p = 1), pad hidden up to a lane multiple.
    return _round_up(hidden, 128)


def _num_tensorcores():
    kind = _device_kind()
    return 2 if (("v7" in kind) or ("tpu7" in kind)) else 1


# ----------------------------------------------------------------------------
# Pallas kernel: single fused chain  x <- relu(x @ W_l + b_l)  over the
# concatenated [keys ; values] block of the current grid step.
# ----------------------------------------------------------------------------
def _pyramid_chain_kernel(k_ref, v_ref, w_ref, b_ref, ok_ref, ov_ref):
    n_layers = w_ref.shape[0]
    rt = k_ref.shape[0]
    pw = k_ref.shape[1]             # packed lane width (= LANE_PAD when H | LANE_PAD)

    # One chain with 2x the rows: weights are pushed to the MXU once per layer
    # per grid step instead of twice (keys + values separately).
    x = jnp.concatenate([k_ref[...], v_ref[...]], axis=0).astype(jnp.bfloat16)
    y = None
    for l in range(n_layers):       # static unroll over the 2 * num_levels layers
        w = w_ref[l]                # (LANE_PAD, LANE_PAD) bf16, block-diagonal
        if l == 0 and pw != w.shape[0]:
            w = w[:pw, :]           # only in the p == 1 fallback path
        y = jnp.dot(x, w, preferred_element_type=jnp.float32) + b_ref[l]
        y = jnp.maximum(y, 0.0)     # bias-add + relu in f32 (v5e-safe)
        x = y.astype(jnp.bfloat16)
    y = y[:, :pw]                   # static no-op in the dense-packed case
    ok_ref[...] = y[:rt].astype(ok_ref.dtype)
    ov_ref[...] = y[rt:].astype(ov_ref.dtype)


# ----------------------------------------------------------------------------
# Parameter construction (deterministic, mirrors PyramidCompressor.__init__)
# ----------------------------------------------------------------------------
def make_pyramid_params(hidden_size, compression_ratio=0.5, num_levels=3,
                        decay_factor=0.8, key=None):
    """Returns list of (W, b) in pipeline order enc_0..enc_{L-1}, dec_{L-1}..dec_0.
    W is stored as (in, out), i.e. already transposed relative to nn.Linear."""
    if key is None:
        key = jax.random.PRNGKey(42)
    enc, dec = [], []
    current = hidden_size
    ratio = compression_ratio
    for _ in range(num_levels):
        out = max(int(current * ratio), 1)
        key, k_e, k_d = jax.random.split(key, 3)
        # xavier_normal_: std = sqrt(2 / (fan_in + fan_out)); bias = 0
        std = math.sqrt(2.0 / (current + out))
        enc.append((jax.random.normal(k_e, (current, out), jnp.float32) * std,
                    jnp.zeros((out,), jnp.float32)))
        dec.append((jax.random.normal(k_d, (out, current), jnp.float32) * std,
                    jnp.zeros((current,), jnp.float32)))
        current = out
        ratio *= decay_factor
    return enc + dec[::-1]


def _stack_params(layers, hidden, lane_pad, p):
    """Replicate every (W, b) p times block-diagonally inside one
    (lane_pad, lane_pad) tile (group g occupies lanes [g*hidden, (g+1)*hidden))
    and stack all layers into a single weight / bias tensor."""
    n = len(layers)
    w_stack = jnp.zeros((n, lane_pad, lane_pad), jnp.float32)
    b_stack = jnp.zeros((n, 1, lane_pad), jnp.float32)
    for l, (w, b) in enumerate(layers):
        din, dout = w.shape
        for g in range(p):
            r0 = g * hidden
            w_stack = w_stack.at[l, r0:r0 + din, r0:r0 + dout].set(w)
            b_stack = b_stack.at[l, 0, r0:r0 + dout].set(b)
    return w_stack.astype(jnp.bfloat16), b_stack


# ----------------------------------------------------------------------------
# Wrapper
# ----------------------------------------------------------------------------
def pyramid_forward(keys, values, layers, row_tile=DEFAULT_ROW_TILE):
    B, S, H = keys.shape
    rows = B * S

    lane_pad = _pick_lane_pad(H)
    p = lane_pad // H if lane_pad % H == 0 else 1
    pw = p * H                      # packed lane width of the k/v slabs

    keys_flat = keys.reshape(rows, H)        # metadata reshape
    values_flat = values.reshape(rows, H)
    rows_pad = _round_up(rows, p)
    if rows_pad != rows:                     # usually a no-op for KV-cache sizes
        padcfg = ((0, rows_pad - rows), (0, 0))
        keys_flat = jnp.pad(keys_flat, padcfg)
        values_flat = jnp.pad(values_flat, padcfg)
    rows_packed = rows_pad // p
    kp = keys_flat.reshape(rows_packed, pw)  # fold p rows into the lane axis
    vp = values_flat.reshape(rows_packed, pw)

    w_stack, b_stack = _stack_params(layers, H, lane_pad, p)
    n_layers = w_stack.shape[0]

    # Row-tile selection (in packed rows).
    rt = min(row_tile, rows_packed)
    if _num_tensorcores() > 1 and rows_packed >= 16:
        # v7x megacore: ensure the "parallel" axis has >= 2 grid steps.
        rt = min(rt, _round_up(pl.cdiv(rows_packed, 2), 8))
    if rt < rows_packed:
        rt = max(8, (rt // 8) * 8)           # sublane-aligned unless full extent
    grid = (pl.cdiv(rows_packed, rt),)

    kv_spec = pl.BlockSpec((rt, pw), lambda i: (i, 0))
    # Grid-invariant weights/biases (constant index_map -> fetched once).
    w_spec = pl.BlockSpec((n_layers, lane_pad, lane_pad), lambda i: (0, 0, 0))
    b_spec = pl.BlockSpec((n_layers, 1, lane_pad), lambda i: (0, 0, 0))

    itemsize = keys.dtype.itemsize
    cost = pl.CostEstimate(
        flops=2 * (2 * rows_packed) * lane_pad * lane_pad * n_layers,
        transcendentals=0,
        bytes_accessed=(4 * rows_pad * H * itemsize          # k/v in + k/v out
                        + w_stack.size * 2 + b_stack.size * 4),
    )

    ck_p, cv_p = pl.pallas_call(
        _pyramid_chain_kernel,
        out_shape=(jax.ShapeDtypeStruct((rows_packed, pw), keys.dtype),
                   jax.ShapeDtypeStruct((rows_packed, pw), values.dtype)),
        grid_spec=pltpu.PrefetchScalarGridSpec(
            num_scalar_prefetch=0,
            grid=grid,
            in_specs=[kv_spec, kv_spec, w_spec, b_spec],
            out_specs=[kv_spec, kv_spec],
        ),
        compiler_params=pltpu.CompilerParams(
            dimension_semantics=("parallel",),
            vmem_limit_bytes=48 * 1024 * 1024,
        ),
        cost_estimate=cost,
    )(kp, vp, w_stack, b_stack)

    compressed_keys = ck_p.reshape(rows_pad, H)[:rows].reshape(B, S, H)
    compressed_values = cv_p.reshape(rows_pad, H)[:rows].reshape(B, S, H)

    # Buffer bookkeeping from the torch module (compression_stats/sample_count)
    # is host-side scalar glue; output shape == input shape so ratio == 1.0 here.
    current_ratio = compressed_keys.size / keys.size  # noqa: F841

    # TODO(synk): importance-guided path (argsort + per-level gather/scatter of
    # variable-size row groups) is data-dependent ragged indexing; not lowered.
    return compressed_keys, compressed_values


# Pure-JAX reference of the same bf16-quantized pipeline, for validation.
def _reference_chain(x_flat, layers):
    x = x_flat.astype(jnp.bfloat16)
    y = None
    for w, b in layers:
        y = jnp.dot(x, w.astype(jnp.bfloat16),
                    preferred_element_type=jnp.float32) + b
        y = jnp.maximum(y, 0.0)
        x = y.astype(jnp.bfloat16)
    return y


if __name__ == "__main__":
    root = jax.random.PRNGKey(0)
    k_keys, k_vals, k_params = jax.random.split(root, 3)

    B, S, H = 2, 8, 32
    keys = jax.random.normal(k_keys, (B, S, H), jnp.float32)
    values = jax.random.normal(k_vals, (B, S, H), jnp.float32)

    layers = make_pyramid_params(H, compression_ratio=0.5, num_levels=3,
                                 decay_factor=0.8, key=k_params)

    ck, cv = pyramid_forward(keys, values, layers)
    jax.block_until_ready((ck, cv))

    ref_k = _reference_chain(keys.reshape(-1, H), layers).reshape(B, S, H)
    ref_v = _reference_chain(values.reshape(-1, H), layers).reshape(B, S, H)

    assert ck.shape == (B, S, H) and cv.shape == (B, S, H)
    assert jnp.allclose(ck, ref_k, atol=1e-2, rtol=1e-2)
    assert jnp.allclose(cv, ref_v, atol=1e-2, rtol=1e-2)

    print("KERNEL_OK")
</pallas_src>

<mosaic_0001>
module attributes {stable_mosaic.version = 11 : i64} {
  func.func @_pyramid_chain_kernel(%arg0: i32, %arg1: memref<4x128xf32, #tpu.memory_space<vmem>>, %arg2: memref<4x128xf32, #tpu.memory_space<vmem>>, %arg3: memref<6x128x128xbf16, #tpu.memory_space<vmem>>, %arg4: memref<6x1x128xf32, #tpu.memory_space<vmem>>, %arg5: memref<4x128xf32, #tpu.memory_space<vmem>>, %arg6: memref<4x128xf32, #tpu.memory_space<vmem>>) attributes {dimension_semantics = [#tpu.dimension_semantics<parallel>], iteration_bounds = array<i64: 1>, scalar_prefetch = 0 : i64, scratch_operands = 0 : i64, tpu.core_type = #tpu.core_type<tc>, window_params = [{transform_indices = @transform_0, window_bounds = array<i64: 4, 128>}, {transform_indices = @transform_1, window_bounds = array<i64: 4, 128>}, {pipeline_mode = #tpu.pipeline_mode<synchronous>, transform_indices = @transform_2, window_bounds = array<i64: 6, 128, 128>}, {pipeline_mode = #tpu.pipeline_mode<synchronous>, transform_indices = @transform_3, window_bounds = array<i64: 6, 1, 128>}, {transform_indices = @transform_4, window_bounds = array<i64: 4, 128>}, {transform_indices = @transform_5, window_bounds = array<i64: 4, 128>}]} {
    %c0 = arith.constant 0 : index
    %c0_0 = arith.constant 0 : index
    %0 = vector.load %arg1[%c0, %c0_0] : memref<4x128xf32, #tpu.memory_space<vmem>>, vector<4x128xf32>
    %c0_1 = arith.constant 0 : index
    %c0_2 = arith.constant 0 : index
    %1 = vector.load %arg2[%c0_1, %c0_2] : memref<4x128xf32, #tpu.memory_space<vmem>>, vector<4x128xf32>
    %2 = tpu.concatenate %0, %1 in 0 : vector<4x128xf32>, vector<4x128xf32> -> vector<8x128xf32>
    %3 = arith.truncf %2 : vector<8x128xf32> to vector<8x128xbf16>
    %c0_3 = arith.constant 0 : index
    %c0_4 = arith.constant 0 : index
    %c0_5 = arith.constant 0 : index
    %4 = vector.load %arg3[%c0_3, %c0_4, %c0_5] : memref<6x128x128xbf16, #tpu.memory_space<vmem>>, vector<1x128x128xbf16>
    %5 = vector.shape_cast %4 : vector<1x128x128xbf16> to vector<128x128xbf16>
    %cst = arith.constant dense<0.000000e+00> : vector<8x128xf32>
    %6 = tpu.matmul %3, %5, %cst {dimension_numbers = #tpu.dot_dimension_numbers<[1], [0], [0], [1], [0, 0, 1, 1], [], []>} : vector<8x128xbf16>, vector<128x128xbf16>, vector<8x128xf32> -> vector<8x128xf32>
    %c0_6 = arith.constant 0 : index
    %c0_7 = arith.constant 0 : index
    %c0_8 = arith.constant 0 : index
    %7 = vector.load %arg4[%c0_6, %c0_7, %c0_8] : memref<6x1x128xf32, #tpu.memory_space<vmem>>, vector<1x1x128xf32>
    %8 = vector.shape_cast %7 : vector<1x1x128xf32> to vector<1x128xf32>
    %9 = vector.broadcast %8 : vector<1x128xf32> to vector<8x128xf32>
    %10 = arith.addf %6, %9 : vector<8x128xf32>
    %cst_9 = arith.constant 0.000000e+00 : f32
    %11 = vector.broadcast %cst_9 : f32 to vector<8x128xf32>
    %12 = arith.maximumf %10, %11 : vector<8x128xf32>
    %13 = arith.truncf %12 : vector<8x128xf32> to vector<8x128xbf16>
    %c1 = arith.constant 1 : index
    %c0_10 = arith.constant 0 : index
    %c0_11 = arith.constant 0 : index
    %14 = vector.load %arg3[%c1, %c0_10, %c0_11] : memref<6x128x128xbf16, #tpu.memory_space<vmem>>, vector<1x128x128xbf16>
    %15 = vector.shape_cast %14 : vector<1x128x128xbf16> to vector<128x128xbf16>
    %cst_12 = arith.constant dense<0.000000e+00> : vector<8x128xf32>
    %16 = tpu.matmul %13, %15, %cst_12 {dimension_numbers = #tpu.dot_dimension_numbers<[1], [0], [0], [1], [0, 0, 1, 1], [], []>} : vector<8x128xbf16>, vector<128x128xbf16>, vector<8x128xf32> -> vector<8x128xf32>
    %c1_13 = arith.constant 1 : index
    %c0_14 = arith.constant 0 : index
    %c0_15 = arith.constant 0 : index
    %17 = vector.load %arg4[%c1_13, %c0_14, %c0_15] : memref<6x1x128xf32, #tpu.memory_space<vmem>>, vector<1x1x128xf32>
    %18 = vector.shape_cast %17 : vector<1x1x128xf32> to vector<1x128xf32>
    %19 = vector.broadcast %18 : vector<1x128xf32> to vector<8x128xf32>
    %20 = arith.addf %16, %19 : vector<8x128xf32>
    %cst_16 = arith.constant 0.000000e+00 : f32
    %21 = vector.broadcast %cst_16 : f32 to vector<8x128xf32>
    %22 = arith.maximumf %20, %21 : vector<8x128xf32>
    %23 = arith.truncf %22 : vector<8x128xf32> to vector<8x128xbf16>
    %c2 = arith.constant 2 : index
    %c0_17 = arith.constant 0 : index
    %c0_18 = arith.constant 0 : index
    %24 = vector.load %arg3[%c2, %c0_17, %c0_18] : memref<6x128x128xbf16, #tpu.memory_space<vmem>>, vector<1x128x128xbf16>
    %25 = vector.shape_cast %24 : vector<1x128x128xbf16> to vector<128x128xbf16>
    %cst_19 = arith.constant dense<0.000000e+00> : vector<8x128xf32>
    %26 = tpu.matmul %23, %25, %cst_19 {dimension_numbers = #tpu.dot_dimension_numbers<[1], [0], [0], [1], [0, 0, 1, 1], [], []>} : vector<8x128xbf16>, vector<128x128xbf16>, vector<8x128xf32> -> vector<8x128xf32>
    %c2_20 = arith.constant 2 : index
    %c0_21 = arith.constant 0 : index
    %c0_22 = arith.constant 0 : index
    %27 = vector.load %arg4[%c2_20, %c0_21, %c0_22] : memref<6x1x128xf32, #tpu.memory_space<vmem>>, vector<1x1x128xf32>
    %28 = vector.shape_cast %27 : vector<1x1x128xf32> to vector<1x128xf32>
    %29 = vector.broadcast %28 : vector<1x128xf32> to vector<8x128xf32>
    %30 = arith.addf %26, %29 : vector<8x128xf32>
    %cst_23 = arith.constant 0.000000e+00 : f32
    %31 = vector.broadcast %cst_23 : f32 to vector<8x128xf32>
    %32 = arith.maximumf %30, %31 : vector<8x128xf32>
    %33 = arith.truncf %32 : vector<8x128xf32> to vector<8x128xbf16>
    %c3 = arith.constant 3 : index
    %c0_24 = arith.constant 0 : index
    %c0_25 = arith.constant 0 : index
    %34 = vector.load %arg3[%c3, %c0_24, %c0_25] : memref<6x128x128xbf16, #tpu.memory_space<vmem>>, vector<1x128x128xbf16>
    %35 = vector.shape_cast %34 : vector<1x128x128xbf16> to vector<128x128xbf16>
    %cst_26 = arith.constant dense<0.000000e+00> : vector<8x128xf32>
    %36 = tpu.matmul %33, %35, %cst_26 {dimension_numbers = #tpu.dot_dimension_numbers<[1], [0], [0], [1], [0, 0, 1, 1], [], []>} : vector<8x128xbf16>, vector<128x128xbf16>, vector<8x128xf32> -> vector<8x128xf32>
    %c3_27 = arith.constant 3 : index
    %c0_28 = arith.constant 0 : index
    %c0_29 = arith.constant 0 : index
    %37 = vector.load %arg4[%c3_27, %c0_28, %c0_29] : memref<6x1x128xf32, #tpu.memory_space<vmem>>, vector<1x1x128xf32>
    %38 = vector.shape_cast %37 : vector<1x1x128xf32> to vector<1x128xf32>
    %39 = vector.broadcast %38 : vector<1x128xf32> to vector<8x128xf32>
    %40 = arith.addf %36, %39 : vector<8x128xf32>
    %cst_30 = arith.constant 0.000000e+00 : f32
    %41 = vector.broadcast %cst_30 : f32 to vector<8x128xf32>
    %42 = arith.maximumf %40, %41 : vector<8x128xf32>
    %43 = arith.truncf %42 : vector<8x128xf32> to vector<8x128xbf16>
    %c4 = arith.constant 4 : index
    %c0_31 = arith.constant 0 : index
    %c0_32 = arith.constant 0 : index
    %44 = vector.load %arg3[%c4, %c0_31, %c0_32] : memref<6x128x128xbf16, #tpu.memory_space<vmem>>, vector<1x128x128xbf16>
    %45 = vector.shape_cast %44 : vector<1x128x128xbf16> to vector<128x128xbf16>
    %cst_33 = arith.constant dense<0.000000e+00> : vector<8x128xf32>
    %46 = tpu.matmul %43, %45, %cst_33 {dimension_numbers = #tpu.dot_dimension_numbers<[1], [0], [0], [1], [0, 0, 1, 1], [], []>} : vector<8x128xbf16>, vector<128x128xbf16>, vector<8x128xf32> -> vector<8x128xf32>
    %c4_34 = arith.constant 4 : index
    %c0_35 = arith.constant 0 : index
    %c0_36 = arith.constant 0 : index
    %47 = vector.load %arg4[%c4_34, %c0_35, %c0_36] : memref<6x1x128xf32, #tpu.memory_space<vmem>>, vector<1x1x128xf32>
    %48 = vector.shape_cast %47 : vector<1x1x128xf32> to vector<1x128xf32>
    %49 = vector.broadcast %48 : vector<1x128xf32> to vector<8x128xf32>
    %50 = arith.addf %46, %49 : vector<8x128xf32>
    %cst_37 = arith.constant 0.000000e+00 : f32
    %51 = vector.broadcast %cst_37 : f32 to vector<8x128xf32>
    %52 = arith.maximumf %50, %51 : vector<8x128xf32>
    %53 = arith.truncf %52 : vector<8x128xf32> to vector<8x128xbf16>
    %c5 = arith.constant 5 : index
    %c0_38 = arith.constant 0 : index
    %c0_39 = arith.constant 0 : index
    %54 = vector.load %arg3[%c5, %c0_38, %c0_39] : memref<6x128x128xbf16, #tpu.memory_space<vmem>>, vector<1x128x128xbf16>
    %55 = vector.shape_cast %54 : vector<1x128x128xbf16> to vector<128x128xbf16>
    %cst_40 = arith.constant dense<0.000000e+00> : vector<8x128xf32>
    %56 = tpu.matmul %53, %55, %cst_40 {dimension_numbers = #tpu.dot_dimension_numbers<[1], [0], [0], [1], [0, 0, 1, 1], [], []>} : vector<8x128xbf16>, vector<128x128xbf16>, vector<8x128xf32> -> vector<8x128xf32>
    %c5_41 = arith.constant 5 : index
    %c0_42 = arith.constant 0 : index
    %c0_43 = arith.constant 0 : index
    %57 = vector.load %arg4[%c5_41, %c0_42, %c0_43] : memref<6x1x128xf32, #tpu.memory_space<vmem>>, vector<1x1x128xf32>
    %58 = vector.shape_cast %57 : vector<1x1x128xf32> to vector<1x128xf32>
    %59 = vector.broadcast %58 : vector<1x128xf32> to vector<8x128xf32>
    %60 = arith.addf %56, %59 : vector<8x128xf32>
    %cst_44 = arith.constant 0.000000e+00 : f32
    %61 = vector.broadcast %cst_44 : f32 to vector<8x128xf32>
    %62 = arith.maximumf %60, %61 : vector<8x128xf32>
    %63 = vector.extract_strided_slice %62 {offsets = [0, 0], sizes = [4, 128], strides = [1, 1]} : vector<8x128xf32> to vector<4x128xf32>
    %c0_45 = arith.constant 0 : index
    %c0_46 = arith.constant 0 : index
    %64 = vector.load %arg5[%c0_45, %c0_46] : memref<4x128xf32, #tpu.memory_space<vmem>>, vector<4x128xf32>
    tpu.vector_store %arg5[%c0_45, %c0_46], %63 {strides = array<i32>} : memref<4x128xf32, #tpu.memory_space<vmem>>, vector<4x128xf32>,
    %65 = vector.extract_strided_slice %62 {offsets = [4, 0], sizes = [4, 128], strides = [1, 1]} : vector<8x128xf32> to vector<4x128xf32>
    %c0_47 = arith.constant 0 : index
    %c0_48 = arith.constant 0 : index
    %66 = vector.load %arg6[%c0_47, %c0_48] : memref<4x128xf32, #tpu.memory_space<vmem>>, vector<4x128xf32>
    tpu.vector_store %arg6[%c0_47, %c0_48], %65 {strides = array<i32>} : memref<4x128xf32, #tpu.memory_space<vmem>>, vector<4x128xf32>,
    return
  }
  func.func @transform_0(%arg0: i32) -> (i32, i32) {
    %c0_i32 = arith.constant 0 : i32
    %c0_i32_0 = arith.constant 0 : i32
    return %arg0, %c0_i32 : i32, i32
  }
  func.func @transform_1(%arg0: i32) -> (i32, i32) {
    %c0_i32 = arith.constant 0 : i32
    %c0_i32_0 = arith.constant 0 : i32
    return %arg0, %c0_i32 : i32, i32
  }
  func.func @transform_2(%arg0: i32) -> (i32, i32, i32) {
    %c0_i32 = arith.constant 0 : i32
    %c0_i32_0 = arith.constant 0 : i32
    %c0_i32_1 = arith.constant 0 : i32
    %c0_i32_2 = arith.constant 0 : i32
    return %c0_i32, %c0_i32_0, %c0_i32_1 : i32, i32, i32
  }
  func.func @transform_3(%arg0: i32) -> (i32, i32, i32) {
    %c0_i32 = arith.constant 0 : i32
    %c0_i32_0 = arith.constant 0 : i32
    %c0_i32_1 = arith.constant 0 : i32
    %c0_i32_2 = arith.constant 0 : i32
    return %c0_i32, %c0_i32_0, %c0_i32_1 : i32, i32, i32
  }
  func.func @transform_4(%arg0: i32) -> (i32, i32) {
    %c0_i32 = arith.constant 0 : i32
    %c0_i32_0 = arith.constant 0 : i32
    return %arg0, %c0_i32 : i32, i32
  }
  func.func @transform_5(%arg0: i32) -> (i32, i32) {
    %c0_i32 = arith.constant 0 : i32
    %c0_i32_0 = arith.constant 0 : i32
    return %arg0, %c0_i32 : i32, i32
  }
}

</mosaic_0001>

<llo_original>
// kernel: tpu_custom_call.1
$region0: #{tpu_custom_call.1}
  #allocation0 [shape = 'u32[]', space=smem, size = 0x4, offset = 0x4, fixed_abs, tag = 'smem constant byte address 0x4 - core index']
  #allocation1 [shape = 'u32[144,128]{1,0:T(1,128)}', space=vmem, size = 0x12000, scoped, tag = 'internal scratch']
  %s0 = inlined_call_operand.hbm [shape: f32[4,128], index: 0, kind: input, shape index: {}]
  %s1 = inlined_call_operand.hbm [shape: f32[4,128], index: 1, kind: input, shape index: {}]
  %s2 = inlined_call_operand.hbm [shape: bf16[6,128,128], index: 2, kind: input, shape index: {}]
  %s3 = inlined_call_operand.vmem [shape: f32[6,1,128], index: 3, kind: input, shape index: {}]
  %s4 = inlined_call_operand.hbm [shape: f32[4,128], index: 4, kind: output, shape index: {0}]
  %s5 = inlined_call_operand.hbm [shape: f32[4,128], index: 5, kind: output, shape index: {1}]
  %6 = xla_tuple %s4, %s5
  %s7 = sld [smem:[#allocation0]]
  $region46: #{tpu_custom_call.1} parent=0
    _
  %s9 = ssub.s32 1, %s7
  %s10 = scalar_select 0, %s9, %s7
  $region1: #{tpu_custom_call.1} parent=0
    #allocation2 [shape = 'u8[2048]{0}', space=vmem, size = 0x800, scoped, tag = 'input window, operand 0, single buffered']
    #allocation3 [shape = 's32[1]{0}', space=sflag, size = 0x4, scoped, tag = 'scoped memory for tpu_custom_call.1']
    #allocation4 [shape = 's32[1]{0}', space=sflag, size = 0x4, scoped, tag = 'scoped memory for tpu_custom_call.1']
    #allocation5 [shape = 'u8[2048]{0}', space=vmem, size = 0x800, scoped, tag = 'input window, operand 1, single buffered']
    #allocation6 [shape = 's32[1]{0}', space=sflag, size = 0x4, scoped, tag = 'scoped memory for tpu_custom_call.1']
    #allocation7 [shape = 'u8[196608]{0}', space=vmem, size = 0x30000, scoped, tag = 'input window, operand 2, single buffered']
    #allocation8 [shape = 'u8[2048]{0}', space=vmem, size = 0x800, scoped, tag = 'output window, operand 0, single buffered']
    #allocation9 [shape = 'u8[2048]{0}', space=vmem, size = 0x800, scoped, tag = 'output window, operand 1, single buffered']
    #allocation10 [shape = 's32[1]{0}', space=sflag, size = 0x4, scoped, tag = 'scoped memory for tpu_custom_call.1']
    %11 = vsyncpa [#allocation3], 0
    %12 = vsyncpa [#allocation6], 0
    %13 = vsyncpa [#allocation4], 0
    %14 = vsyncpa [#allocation10], 0
    // Predicated region
    $region2: #{tpu_custom_call.1} parent=1 // pred_check
      _
    $region3: #{tpu_custom_call.1} parent=1 // pred_check_branch
      %16 = sbr.rel (0) target = $region5
    $region4: #{tpu_custom_call.1} parent=1 // pred_region
      %s18 = ssub.s32 64, 64
      %19 = vsyncadd [#allocation3], %s18
      %s21 = sshll.u32 [#allocation2], 4
      %s22 = int_to_ptr.vmem [resolvable:$true] %s21
      %24 = dma.hbm_to_vmem [thread:$0]  %s0, 64, %s22, [#allocation3]
    $region5: #{tpu_custom_call.1} parent=1 // pred_fallthru
      _
    // Predicated region
    $region6: #{tpu_custom_call.1} parent=1 // pred_check
      _
    $region7: #{tpu_custom_call.1} parent=1 // pred_check_branch
      %26 = sbr.rel (0) target = $region9
    $region8: #{tpu_custom_call.1} parent=1 // pred_region
      %s28 = ssub.s32 64, 64
      %29 = vsyncadd [#allocation6], %s28
      %s31 = sshll.u32 [#allocation5], 4
      %s32 = int_to_ptr.vmem [resolvable:$true] %s31
      %34 = dma.hbm_to_vmem [thread:$0]  %s1, 64, %s32, [#allocation6]
    $region9: #{tpu_custom_call.1} parent=1 // pred_fallthru
      _
    // Predicated region
    $region10: #{tpu_custom_call.1} parent=1 // pred_check
      _
    $region11: #{tpu_custom_call.1} parent=1 // pred_check_branch
      %36 = sbr.rel (0) target = $region13
    $region12: #{tpu_custom_call.1} parent=1 // pred_region
      %s38 = ssub.s32 6144, 6144
      %39 = vsyncadd [#allocation6], %s38
      %s40 = sshll.u32 [#allocation7], 4
      %s41 = int_to_ptr.vmem [resolvable:$true] %s40
      %46 = dma.hbm_to_vmem [thread:$0]  %s2, 6144, %s41, [#allocation6], 64, 64, 4
    $region13: #{tpu_custom_call.1} parent=1 // pred_fallthru
      _
    // Predicated region
    $region14: #{tpu_custom_call.1} parent=1 // pred_check
      _
    $region15: #{tpu_custom_call.1} parent=1 // pred_check_branch
      %48 = sbr.rel (0) target = $region17
    $region16: #{tpu_custom_call.1} parent=1 // pred_region
      _
    $region17: #{tpu_custom_call.1} parent=1 // pred_fallthru
      _
    // Predicated region
    $region18: #{tpu_custom_call.1} parent=1 // pred_check
      _
    $region19: #{tpu_custom_call.1} parent=1 // pred_check_branch
      %50 = sbr.rel (0) target = $region21
    $region20: #{tpu_custom_call.1} parent=1 // pred_region
      %51 = dma.done [#allocation3], 64
    $region21: #{tpu_custom_call.1} parent=1 // pred_fallthru
      _
    // Predicated region
    $region22: #{tpu_custom_call.1} parent=1 // pred_check
      _
    $region23: #{tpu_custom_call.1} parent=1 // pred_check_branch
      %53 = sbr.rel (0) target = $region25
    $region24: #{tpu_custom_call.1} parent=1 // pred_region
      %54 = dma.done [#allocation6], 64
    $region25: #{tpu_custom_call.1} parent=1 // pred_fallthru
      _
    // Predicated region
    $region26: #{tpu_custom_call.1} parent=1 // pred_check
      _
    $region27: #{tpu_custom_call.1} parent=1 // pred_check_branch
      %56 = sbr.rel (0) target = $region29
    $region28: #{tpu_custom_call.1} parent=1 // pred_region
      %57 = dma.done [#allocation6], 6144
    $region29: #{tpu_custom_call.1} parent=1 // pred_fallthru
      _
    %v59 = vld [vmem:[#allocation2] sm:$0xf]
    %v60 = vld [vmem:[#allocation5] sm:$0xf]
    %v62 = vrot.slane %v60, 4
    %vm64 = vcmask 1043456
    %v65 = vsel %vm64, %v59, %v62
    %v66 = vpack.c.bf16 %v65, %v65
    %v67 = vld [vmem:[#allocation7] sm:$0xf]
    %v68 = vld [vmem:[#allocation7 + $0x4] sm:$0xf]
    %v69 = vld [vmem:[#allocation7 + $0x8] sm:$0xf]
    %v70 = vld [vmem:[#allocation7 + $0xc] sm:$0xf]
    %v71 = vld [vmem:[#allocation7 + $0x10] sm:$0xf]
    %v72 = vld [vmem:[#allocation7 + $0x14] sm:$0xf]
    %v73 = vld [vmem:[#allocation7 + $0x18] sm:$0xf]
    %v74 = vld [vmem:[#allocation7 + $0x1c] sm:$0xf]
    %v75 = vld [vmem:[#allocation7 + $0x20] sm:$0xf]
    %v76 = vld [vmem:[#allocation7 + $0x24] sm:$0xf]
    %v77 = vld [vmem:[#allocation7 + $0x28] sm:$0xf]
    %v78 = vld [vmem:[#allocation7 + $0x2c] sm:$0xf]
    %v79 = vld [vmem:[#allocation7 + $0x30] sm:$0xf]
    %v80 = vld [vmem:[#allocation7 + $0x34] sm:$0xf]
    %v81 = vld [vmem:[#allocation7 + $0x38] sm:$0xf]
    %v82 = vld [vmem:[#allocation7 + $0x3c] sm:$0xf]
    %v83 = vld [vmem:[%s3] sm:$0x1]
    %v85 = vlaneseq
    %v86 = vshrl.u32 %v85, 7
    %v87 = vsub.s32 0, %v86
    %v88 = vrot.slane %v83, %v87
    %v106 = vunpack.c.l.b16 %v67
    %v107 = vunpack.c.l.b16 %v68
    %v108 = vunpack.c.l.b16 %v69
    %v109 = vunpack.c.l.b16 %v70
    %v110 = vunpack.c.l.b16 %v71
    %v111 = vunpack.c.l.b16 %v72
    %v112 = vunpack.c.l.b16 %v73
    %v113 = vunpack.c.l.b16 %v74
    %v114 = vunpack.c.l.b16 %v75
    %v115 = vunpack.c.l.b16 %v76
    %v116 = vunpack.c.l.b16 %v77
    %v117 = vunpack.c.l.b16 %v78
    %v118 = vunpack.c.l.b16 %v79
    %v119 = vunpack.c.l.b16 %v80
    %v120 = vunpack.c.l.b16 %v81
    %v121 = vunpack.c.l.b16 %v82
    %v122 = vpack.c.b16 %v107, %v106
    %v123 = vpack.c.b16 %v109, %v108
    %v124 = vpack.c.b16 %v111, %v110
    %v125 = vpack.c.b16 %v113, %v112
    %v126 = vpack.c.b16 %v115, %v114
    %v127 = vpack.c.b16 %v117, %v116
    %v128 = vpack.c.b16 %v119, %v118
    %v129 = vpack.c.b16 %v121, %v120
    %138 = vmatprep.subr.bf16.mxu0 0
    %139 = vmatpush1.bf16.msra.mxu0 %v122
    %140 = vmatprep.subr.bf16.mxu0 0
    %141 = vmatpush1.bf16.msra.mxu0 %v123
    %142 = vmatprep.subr.bf16.mxu0 0
    %143 = vmatpush1.bf16.msra.mxu0 %v124
    %144 = vmatprep.subr.bf16.mxu0 0
    %145 = vmatpush1.bf16.msra.mxu0 %v125
    %146 = vmatprep.subr.bf16.mxu0 0
    %147 = vmatpush1.bf16.msra.mxu0 %v126
    %148 = vmatprep.subr.bf16.mxu0 0
    %149 = vmatpush1.bf16.msra.mxu0 %v127
    %150 = vmatprep.subr.bf16.mxu0 0
    %151 = vmatpush1.bf16.msra.mxu0 %v128
    %152 = vmatprep.subr.bf16.mxu0 0
    %153 = vmatpush1.bf16.msra.mxu0 %v129
    %154 = vmatprep.subr.bf16.mxu0 0
    %155 = vmatpush1.bf16.msra.mxu0 0
    %156 = vmatprep.subr.bf16.mxu0 0
    %157 = vmatpush1.bf16.msra.mxu0 0
    %158 = vmatprep.subr.bf16.mxu0 0
    %159 = vmatpush1.bf16.msra.mxu0 0
    %160 = vmatprep.subr.bf16.mxu0 0
    %161 = vmatpush1.bf16.msra.mxu0 0
    %162 = vmatprep.subr.bf16.mxu0 0
    %163 = vmatpush1.bf16.msra.mxu0 0
    %164 = vmatprep.subr.bf16.mxu0 0
    %165 = vmatpush1.bf16.msra.mxu0 0
    %166 = vmatprep.subr.bf16.mxu0 0
    %167 = vmatpush1.bf16.msra.mxu0 0
    %168 = vmatprep.subr.bf16.mxu0 0
    %169 = vmatpush1.bf16.msra.mxu0 0
    %170 = vmatprep.mubr.bf16.mxu0 0
    %171 = vmatmul.mubr.bf16.gmra.mrb[0].mxu0 %v66
    %v172 = vpop.f32.mrb[0].mxu0
    %v173 = vadd.f32 %v88, %v172
    %v174 = vpop.f32.mrb[0].mxu0
    %v175 = vpop.f32.mrb[0].mxu0
    %v176 = vpop.f32.mrb[0].mxu0
    %177 = vdwg.mxu0
    %v178 = vmax.f32 %v173, 0.0
    %v179 = vpack.c.bf16 %v178, %v178
    %s180 = scalar_lea.vmem [#allocation7], 64
    %v181 = vld [vmem:[%s180] sm:$0xf]
    %v182 = vld [vmem:[%s180 + $0x4] sm:$0xf]
    %v183 = vld [vmem:[%s180 + $0x8] sm:$0xf]
    %v184 = vld [vmem:[%s180 + $0xc] sm:$0xf]
    %v185 = vld [vmem:[%s180 + $0x10] sm:$0xf]
    %v186 = vld [vmem:[%s180 + $0x14] sm:$0xf]
    %v187 = vld [vmem:[%s180 + $0x18] sm:$0xf]
    %v188 = vld [vmem:[%s180 + $0x1c] sm:$0xf]
    %v189 = vld [vmem:[%s180 + $0x20] sm:$0xf]
    %v190 = vld [vmem:[%s180 + $0x24] sm:$0xf]
    %v191 = vld [vmem:[%s180 + $0x28] sm:$0xf]
    %v192 = vld [vmem:[%s180 + $0x2c] sm:$0xf]
    %v193 = vld [vmem:[%s180 + $0x30] sm:$0xf]
    %v194 = vld [vmem:[%s180 + $0x34] sm:$0xf]
    %v195 = vld [vmem:[%s180 + $0x38] sm:$0xf]
    %v196 = vld [vmem:[%s180 + $0x3c] sm:$0xf]
    %s197 = scalar_lea.vmem %s3, 1
    %v198 = vld [vmem:[%s197] sm:$0x1]
    %v200 = vlaneseq
    %v201 = vshrl.u32 %v200, 7
    %v202 = vsub.s32 0, %v201
    %v203 = vrot.slane %v198, %v202
    %v221 = vunpack.c.l.b16 %v181
    %v222 = vunpack.c.l.b16 %v182
    %v223 = vunpack.c.l.b16 %v183
    %v224 = vunpack.c.l.b16 %v184
    %v225 = vunpack.c.l.b16 %v185
    %v226 = vunpack.c.l.b16 %v186
    %v227 = vunpack.c.l.b16 %v187
    %v228 = vunpack.c.l.b16 %v188
    %v229 = vunpack.c.l.b16 %v189
    %v230 = vunpack.c.l.b16 %v190
    %v231 = vunpack.c.l.b16 %v191
    %v232 = vunpack.c.l.b16 %v192
    %v233 = vunpack.c.l.b16 %v193
    %v234 = vunpack.c.l.b16 %v194
    %v235 = vunpack.c.l.b16 %v195
    %v236 = vunpack.c.l.b16 %v196
    %v237 = vpack.c.b16 %v222, %v221
    %v238 = vpack.c.b16 %v224, %v223
    %v239 = vpack.c.b16 %v226, %v225
    %v240 = vpack.c.b16 %v228, %v227
    %v241 = vpack.c.b16 %v230, %v229
    %v242 = vpack.c.b16 %v232, %v231
    %v243 = vpack.c.b16 %v234, %v233
    %v244 = vpack.c.b16 %v236, %v235
    %253 = vmatprep.subr.bf16.mxu0 0
    %254 = vmatpush1.bf16.msra.mxu0 %v237
    %255 = vmatprep.subr.bf16.mxu0 0
    %256 = vmatpush1.bf16.msra.mxu0 %v238
    %257 = vmatprep.subr.bf16.mxu0 0
    %258 = vmatpush1.bf16.msra.mxu0 %v239
    %259 = vmatprep.subr.bf16.mxu0 0
    %260 = vmatpush1.bf16.msra.mxu0 %v240
    %261 = vmatprep.subr.bf16.mxu0 0
    %262 = vmatpush1.bf16.msra.mxu0 %v241
    %263 = vmatprep.subr.bf16.mxu0 0
    %264 = vmatpush1.bf16.msra.mxu0 %v242
    %265 = vmatprep.subr.bf16.mxu0 0
    %266 = vmatpush1.bf16.msra.mxu0 %v243
    %267 = vmatprep.subr.bf16.mxu0 0
    %268 = vmatpush1.bf16.msra.mxu0 %v244
    %269 = vmatprep.subr.bf16.mxu0 0
    %270 = vmatpush1.bf16.msra.mxu0 0
    %271 = vmatprep.subr.bf16.mxu0 0
    %272 = vmatpush1.bf16.msra.mxu0 0
    %273 = vmatprep.subr.bf16.mxu0 0
    %274 = vmatpush1.bf16.msra.mxu0 0
    %275 = vmatprep.subr.bf16.mxu0 0
    %276 = vmatpush1.bf16.msra.mxu0 0
    %277 = vmatprep.subr.bf16.mxu0 0
    %278 = vmatpush1.bf16.msra.mxu0 0
    %279 = vmatprep.subr.bf16.mxu0 0
    %280 = vmatpush1.bf16.msra.mxu0 0
    %281 = vmatprep.subr.bf16.mxu0 0
    %282 = vmatpush1.bf16.msra.mxu0 0
    %283 = vmatprep.subr.bf16.mxu0 0
    %284 = vmatpush1.bf16.msra.mxu0 0
    %285 = vmatprep.mubr.bf16.mxu0 0
    %286 = vmatmul.mubr.bf16.gmra.mrb[0].mxu0 %v179
    %v287 = vpop.f32.mrb[0].mxu0
    %v288 = vadd.f32 %v203, %v287
    %v289 = vpop.f32.mrb[0].mxu0
    %v290 = vpop.f32.mrb[0].mxu0
    %v291 = vpop.f32.mrb[0].mxu0
    %292 = vdwg.mxu0
    %v293 = vmax.f32 %v288, 0.0
    %v294 = vpack.c.bf16 %v293, %v293
    %s295 = scalar_lea.vmem [#allocation7], 128
    %v296 = vld [vmem:[%s295] sm:$0xf]
    %v297 = vld [vmem:[%s295 + $0x4] sm:$0xf]
    %v298 = vld [vmem:[%s295 + $0x8] sm:$0xf]
    %v299 = vld [vmem:[%s295 + $0xc] sm:$0xf]
    %v300 = vld [vmem:[%s295 + $0x10] sm:$0xf]
    %v301 = vld [vmem:[%s295 + $0x14] sm:$0xf]
    %v302 = vld [vmem:[%s295 + $0x18] sm:$0xf]
    %v303 = vld [vmem:[%s295 + $0x1c] sm:$0xf]
    %v304 = vld [vmem:[%s295 + $0x20] sm:$0xf]
    %v305 = vld [vmem:[%s295 + $0x24] sm:$0xf]
    %v306 = vld [vmem:[%s295 + $0x28] sm:$0xf]
    %v307 = vld [vmem:[%s295 + $0x2c] sm:$0xf]
    %v308 = vld [vmem:[%s295 + $0x30] sm:$0xf]
    %v309 = vld [vmem:[%s295 + $0x34] sm:$0xf]
    %v310 = vld [vmem:[%s295 + $0x38] sm:$0xf]
    %v311 = vld [vmem:[%s295 + $0x3c] sm:$0xf]
    %s312 = scalar_lea.vmem %s3, 2
    %v313 = vld [vmem:[%s312] sm:$0x1]
    %v315 = vlaneseq
    %v316 = vshrl.u32 %v315, 7
    %v317 = vsub.s32 0, %v316
    %v318 = vrot.slane %v313, %v317
    %v336 = vunpack.c.l.b16 %v296
    %v337 = vunpack.c.l.b16 %v297
    %v338 = vunpack.c.l.b16 %v298
    %v339 = vunpack.c.l.b16 %v299
    %v340 = vunpack.c.l.b16 %v300
    %v341 = vunpack.c.l.b16 %v301
    %v342 = vunpack.c.l.b16 %v302
    %v343 = vunpack.c.l.b16 %v303
    %v344 = vunpack.c.l.b16 %v304
    %v345 = vunpack.c.l.b16 %v305
    %v346 = vunpack.c.l.b16 %v306
    %v347 = vunpack.c.l.b16 %v307
    %v348 = vunpack.c.l.b16 %v308
    %v349 = vunpack.c.l.b16 %v309
    %v350 = vunpack.c.l.b16 %v310
    %v351 = vunpack.c.l.b16 %v311
    %v352 = vpack.c.b16 %v337, %v336
    %v353 = vpack.c.b16 %v339, %v338
    %v354 = vpack.c.b16 %v341, %v340
    %v355 = vpack.c.b16 %v343, %v342
    %v356 = vpack.c.b16 %v345, %v344
    %v357 = vpack.c.b16 %v347, %v346
    %v358 = vpack.c.b16 %v349, %v348
    %v359 = vpack.c.b16 %v351, %v350
    %368 = vmatprep.subr.bf16.mxu0 0
    %369 = vmatpush1.bf16.msra.mxu0 %v352
    %370 = vmatprep.subr.bf16.mxu0 0
    %371 = vmatpush1.bf16.msra.mxu0 %v353
    %372 = vmatprep.subr.bf16.mxu0 0
    %373 = vmatpush1.bf16.msra.mxu0 %v354
    %374 = vmatprep.subr.bf16.mxu0 0
    %375 = vmatpush1.bf16.msra.mxu0 %v355
    %376 = vmatprep.subr.bf16.mxu0 0
    %377 = vmatpush1.bf16.msra.mxu0 %v356
    %378 = vmatprep.subr.bf16.mxu0 0
    %379 = vmatpush1.bf16.msra.mxu0 %v357
    %380 = vmatprep.subr.bf16.mxu0 0
    %381 = vmatpush1.bf16.msra.mxu0 %v358
    %382 = vmatprep.subr.bf16.mxu0 0
    %383 = vmatpush1.bf16.msra.mxu0 %v359
    %384 = vmatprep.subr.bf16.mxu0 0
    %385 = vmatpush1.bf16.msra.mxu0 0
    %386 = vmatprep.subr.bf16.mxu0 0
    %387 = vmatpush1.bf16.msra.mxu0 0
    %388 = vmatprep.subr.bf16.mxu0 0
    %389 = vmatpush1.bf16.msra.mxu0 0
    %390 = vmatprep.subr.bf16.mxu0 0
    %391 = vmatpush1.bf16.msra.mxu0 0
    %392 = vmatprep.subr.bf16.mxu0 0
    %393 = vmatpush1.bf16.msra.mxu0 0
    %394 = vmatprep.subr.bf16.mxu0 0
    %395 = vmatpush1.bf16.msra.mxu0 0
    %396 = vmatprep.subr.bf16.mxu0 0
    %397 = vmatpush1.bf16.msra.mxu0 0
    %398 = vmatprep.subr.bf16.mxu0 0
    %399 = vmatpush1.bf16.msra.mxu0 0
    %400 = vmatprep.mubr.bf16.mxu0 0
    %401 = vmatmul.mubr.bf16.gmra.mrb[0].mxu0 %v294
    %v402 = vpop.f32.mrb[0].mxu0
    %v403 = vadd.f32 %v318, %v402
    %v404 = vpop.f32.mrb[0].mxu0
    %v405 = vpop.f32.mrb[0].mxu0
    %v406 = vpop.f32.mrb[0].mxu0
    %407 = vdwg.mxu0
    %v408 = vmax.f32 %v403, 0.0
    %v409 = vpack.c.bf16 %v408, %v408
    %s410 = scalar_lea.vmem [#allocation7], 192
    %v411 = vld [vmem:[%s410] sm:$0xf]
    %v412 = vld [vmem:[%s410 + $0x4] sm:$0xf]
    %v413 = vld [vmem:[%s410 + $0x8] sm:$0xf]
    %v414 = vld [vmem:[%s410 + $0xc] sm:$0xf]
    %v415 = vld [vmem:[%s410 + $0x10] sm:$0xf]
    %v416 = vld [vmem:[%s410 + $0x14] sm:$0xf]
    %v417 = vld [vmem:[%s410 + $0x18] sm:$0xf]
    %v418 = vld [vmem:[%s410 + $0x1c] sm:$0xf]
    %v419 = vld [vmem:[%s410 + $0x20] sm:$0xf]
    %v420 = vld [vmem:[%s410 + $0x24] sm:$0xf]
    %v421 = vld [vmem:[%s410 + $0x28] sm:$0xf]
    %v422 = vld [vmem:[%s410 + $0x2c] sm:$0xf]
    %v423 = vld [vmem:[%s410 + $0x30] sm:$0xf]
    %v424 = vld [vmem:[%s410 + $0x34] sm:$0xf]
    %v425 = vld [vmem:[%s410 + $0x38] sm:$0xf]
    %v426 = vld [vmem:[%s410 + $0x3c] sm:$0xf]
    %s427 = scalar_lea.vmem %s3, 3
    %v428 = vld [vmem:[%s427] sm:$0x1]
    %v430 = vlaneseq
    %v431 = vshrl.u32 %v430, 7
    %v432 = vsub.s32 0, %v431
    %v433 = vrot.slane %v428, %v432
    %v451 = vunpack.c.l.b16 %v411
    %v452 = vunpack.c.l.b16 %v412
    %v453 = vunpack.c.l.b16 %v413
    %v454 = vunpack.c.l.b16 %v414
    %v455 = vunpack.c.l.b16 %v415
    %v456 = vunpack.c.l.b16 %v416
    %v457 = vunpack.c.l.b16 %v417
    %v458 = vunpack.c.l.b16 %v418
    %v459 = vunpack.c.l.b16 %v419
    %v460 = vunpack.c.l.b16 %v420
    %v461 = vunpack.c.l.b16 %v421
    %v462 = vunpack.c.l.b16 %v422
    %v463 = vunpack.c.l.b16 %v423
    %v464 = vunpack.c.l.b16 %v424
    %v465 = vunpack.c.l.b16 %v425
    %v466 = vunpack.c.l.b16 %v426
    %v467 = vpack.c.b16 %v452, %v451
    %v468 = vpack.c.b16 %v454, %v453
    %v469 = vpack.c.b16 %v456, %v455
    %v470 = vpack.c.b16 %v458, %v457
    %v471 = vpack.c.b16 %v460, %v459
    %v472 = vpack.c.b16 %v462, %v461
    %v473 = vpack.c.b16 %v464, %v463
    %v474 = vpack.c.b16 %v466, %v465
    %483 = vmatprep.subr.bf16.mxu0 0
    %484 = vmatpush1.bf16.msra.mxu0 %v467
    %485 = vmatprep.subr.bf16.mxu0 0
    %486 = vmatpush1.bf16.msra.mxu0 %v468
    %487 = vmatprep.subr.bf16.mxu0 0
    %488 = vmatpush1.bf16.msra.mxu0 %v469
    %489 = vmatprep.subr.bf16.mxu0 0
    %490 = vmatpush1.bf16.msra.mxu0 %v470
    %491 = vmatprep.subr.bf16.mxu0 0
    %492 = vmatpush1.bf16.msra.mxu0 %v471
    %493 = vmatprep.subr.bf16.mxu0 0
    %494 = vmatpush1.bf16.msra.mxu0 %v472
    %495 = vmatprep.subr.bf16.mxu0 0
    %496 = vmatpush1.bf16.msra.mxu0 %v473
    %497 = vmatprep.subr.bf16.mxu0 0
    %498 = vmatpush1.bf16.msra.mxu0 %v474
    %499 = vmatprep.subr.bf16.mxu0 0
    %500 = vmatpush1.bf16.msra.mxu0 0
    %501 = vmatprep.subr.bf16.mxu0 0
    %502 = vmatpush1.bf16.msra.mxu0 0
    %503 = vmatprep.subr.bf16.mxu0 0
    %504 = vmatpush1.bf16.msra.mxu0 0
    %505 = vmatprep.subr.bf16.mxu0 0
    %506 = vmatpush1.bf16.msra.mxu0 0
    %507 = vmatprep.subr.bf16.mxu0 0
    %508 = vmatpush1.bf16.msra.mxu0 0
    %509 = vmatprep.subr.bf16.mxu0 0
    %510 = vmatpush1.bf16.msra.mxu0 0
    %511 = vmatprep.subr.bf16.mxu0 0
    %512 = vmatpush1.bf16.msra.mxu0 0
    %513 = vmatprep.subr.bf16.mxu0 0
    %514 = vmatpush1.bf16.msra.mxu0 0
    %515 = vmatprep.mubr.bf16.mxu0 0
    %516 = vmatmul.mubr.bf16.gmra.mrb[0].mxu0 %v409
    %v517 = vpop.f32.mrb[0].mxu0
    %v518 = vadd.f32 %v433, %v517
    %v519 = vpop.f32.mrb[0].mxu0
    %v520 = vpop.f32.mrb[0].mxu0
    %v521 = vpop.f32.mrb[0].mxu0
    %522 = vdwg.mxu0
    %v523 = vmax.f32 %v518, 0.0
    %v524 = vpack.c.bf16 %v523, %v523
    %s525 = scalar_lea.vmem [#allocation7], 256
    %v526 = vld [vmem:[%s525] sm:$0xf]
    %v527 = vld [vmem:[%s525 + $0x4] sm:$0xf]
    %v528 = vld [vmem:[%s525 + $0x8] sm:$0xf]
    %v529 = vld [vmem:[%s525 + $0xc] sm:$0xf]
    %v530 = vld [vmem:[%s525 + $0x10] sm:$0xf]
    %v531 = vld [vmem:[%s525 + $0x14] sm:$0xf]
    %v532 = vld [vmem:[%s525 + $0x18] sm:$0xf]
    %v533 = vld [vmem:[%s525 + $0x1c] sm:$0xf]
    %v534 = vld [vmem:[%s525 + $0x20] sm:$0xf]
    %v535 = vld [vmem:[%s525 + $0x24] sm:$0xf]
    %v536 = vld [vmem:[%s525 + $0x28] sm:$0xf]
    %v537 = vld [vmem:[%s525 + $0x2c] sm:$0xf]
    %v538 = vld [vmem:[%s525 + $0x30] sm:$0xf]
    %v539 = vld [vmem:[%s525 + $0x34] sm:$0xf]
    %v540 = vld [vmem:[%s525 + $0x38] sm:$0xf]
    %v541 = vld [vmem:[%s525 + $0x3c] sm:$0xf]
    %s542 = scalar_lea.vmem %s3, 4
    %v543 = vld [vmem:[%s542] sm:$0x1]
    %v545 = vlaneseq
    %v546 = vshrl.u32 %v545, 7
    %v547 = vsub.s32 0, %v546
    %v548 = vrot.slane %v543, %v547
    %v566 = vunpack.c.l.b16 %v526
    %v567 = vunpack.c.l.b16 %v527
    %v568 = vunpack.c.l.b16 %v528
    %v569 = vunpack.c.l.b16 %v529
    %v570 = vunpack.c.l.b16 %v530
    %v571 = vunpack.c.l.b16 %v531
    %v572 = vunpack.c.l.b16 %v532
    %v573 = vunpack.c.l.b16 %v533
    %v574 = vunpack.c.l.b16 %v534
    %v575 = vunpack.c.l.b16 %v535
    %v576 = vunpack.c.l.b16 %v536
    %v577 = vunpack.c.l.b16 %v537
    %v578 = vunpack.c.l.b16 %v538
    %v579 = vunpack.c.l.b16 %v539
    %v580 = vunpack.c.l.b16 %v540
    %v581 = vunpack.c.l.b16 %v541
    %v582 = vpack.c.b16 %v567, %v566
    %v583 = vpack.c.b16 %v569, %v568
    %v584 = vpack.c.b16 %v571, %v570
    %v585 = vpack.c.b16 %v573, %v572
    %v586 = vpack.c.b16 %v575, %v574
    %v587 = vpack.c.b16 %v577, %v576
    %v588 = vpack.c.b16 %v579, %v578
    %v589 = vpack.c.b16 %v581, %v580
    %598 = vmatprep.subr.bf16.mxu0 0
    %599 = vmatpush1.bf16.msra.mxu0 %v582
    %600 = vmatprep.subr.bf16.mxu0 0
    %601 = vmatpush1.bf16.msra.mxu0 %v583
    %602 = vmatprep.subr.bf16.mxu0 0
    %603 = vmatpush1.bf16.msra.mxu0 %v584
    %604 = vmatprep.subr.bf16.mxu0 0
    %605 = vmatpush1.bf16.msra.mxu0 %v585
    %606 = vmatprep.subr.bf16.mxu0 0
    %607 = vmatpush1.bf16.msra.mxu0 %v586
    %608 = vmatprep.subr.bf16.mxu0 0
    %609 = vmatpush1.bf16.msra.mxu0 %v587
    %610 = vmatprep.subr.bf16.mxu0 0
    %611 = vmatpush1.bf16.msra.mxu0 %v588
    %612 = vmatprep.subr.bf16.mxu0 0
    %613 = vmatpush1.bf16.msra.mxu0 %v589
    %614 = vmatprep.subr.bf16.mxu0 0
    %615 = vmatpush1.bf16.msra.mxu0 0
    %616 = vmatprep.subr.bf16.mxu0 0
    %617 = vmatpush1.bf16.msra.mxu0 0
    %618 = vmatprep.subr.bf16.mxu0 0
    %619 = vmatpush1.bf16.msra.mxu0 0
    %620 = vmatprep.subr.bf16.mxu0 0
    %621 = vmatpush1.bf16.msra.mxu0 0
    %622 = vmatprep.subr.bf16.mxu0 0
    %623 = vmatpush1.bf16.msra.mxu0 0
    %624 = vmatprep.subr.bf16.mxu0 0
    %625 = vmatpush1.bf16.msra.mxu0 0
    %626 = vmatprep.subr.bf16.mxu0 0
    %627 = vmatpush1.bf16.msra.mxu0 0
    %628 = vmatprep.subr.bf16.mxu0 0
    %629 = vmatpush1.bf16.msra.mxu0 0
    %630 = vmatprep.mubr.bf16.mxu0 0
    %631 = vmatmul.mubr.bf16.gmra.mrb[0].mxu0 %v524
    %v632 = vpop.f32.mrb[0].mxu0
    %v633 = vadd.f32 %v548, %v632
    %v634 = vpop.f32.mrb[0].mxu0
    %v635 = vpop.f32.mrb[0].mxu0
    %v636 = vpop.f32.mrb[0].mxu0
    %637 = vdwg.mxu0
    %v638 = vmax.f32 %v633, 0.0
    %v639 = vpack.c.bf16 %v638, %v638
    %s640 = scalar_lea.vmem [#allocation7], 320
    %v641 = vld [vmem:[%s640] sm:$0xf]
    %v642 = vld [vmem:[%s640 + $0x4] sm:$0xf]
    %v643 = vld [vmem:[%s640 + $0x8] sm:$0xf]
    %v644 = vld [vmem:[%s640 + $0xc] sm:$0xf]
    %v645 = vld [vmem:[%s640 + $0x10] sm:$0xf]
    %v646 = vld [vmem:[%s640 + $0x14] sm:$0xf]
    %v647 = vld [vmem:[%s640 + $0x18] sm:$0xf]
    %v648 = vld [vmem:[%s640 + $0x1c] sm:$0xf]
    %v649 = vld [vmem:[%s640 + $0x20] sm:$0xf]
    %v650 = vld [vmem:[%s640 + $0x24] sm:$0xf]
    %v651 = vld [vmem:[%s640 + $0x28] sm:$0xf]
    %v652 = vld [vmem:[%s640 + $0x2c] sm:$0xf]
    %v653 = vld [vmem:[%s640 + $0x30] sm:$0xf]
    %v654 = vld [vmem:[%s640 + $0x34] sm:$0xf]
    %v655 = vld [vmem:[%s640 + $0x38] sm:$0xf]
    %v656 = vld [vmem:[%s640 + $0x3c] sm:$0xf]
    %s657 = scalar_lea.vmem %s3, 5
    %v658 = vld [vmem:[%s657] sm:$0x1]
    %v660 = vlaneseq
    %v661 = vshrl.u32 %v660, 7
    %v662 = vsub.s32 0, %v661
    %v663 = vrot.slane %v658, %v662
    %v681 = vunpack.c.l.b16 %v641
    %v682 = vunpack.c.l.b16 %v642
    %v683 = vunpack.c.l.b16 %v643
    %v684 = vunpack.c.l.b16 %v644
    %v685 = vunpack.c.l.b16 %v645
    %v686 = vunpack.c.l.b16 %v646
    %v687 = vunpack.c.l.b16 %v647
    %v688 = vunpack.c.l.b16 %v648
    %v689 = vunpack.c.l.b16 %v649
    %v690 = vunpack.c.l.b16 %v650
    %v691 = vunpack.c.l.b16 %v651
    %v692 = vunpack.c.l.b16 %v652
    %v693 = vunpack.c.l.b16 %v653
    %v694 = vunpack.c.l.b16 %v654
    %v695 = vunpack.c.l.b16 %v655
    %v696 = vunpack.c.l.b16 %v656
    %v697 = vpack.c.b16 %v682, %v681
    %v698 = vpack.c.b16 %v684, %v683
    %v699 = vpack.c.b16 %v686, %v685
    %v700 = vpack.c.b16 %v688, %v687
    %v701 = vpack.c.b16 %v690, %v689
    %v702 = vpack.c.b16 %v692, %v691
    %v703 = vpack.c.b16 %v694, %v693
    %v704 = vpack.c.b16 %v696, %v695
    %713 = vmatprep.subr.bf16.mxu0 0
    %714 = vmatpush1.bf16.msra.mxu0 %v697
    %715 = vmatprep.subr.bf16.mxu0 0
    %716 = vmatpush1.bf16.msra.mxu0 %v698
    %717 = vmatprep.subr.bf16.mxu0 0
    %718 = vmatpush1.bf16.msra.mxu0 %v699
    %719 = vmatprep.subr.bf16.mxu0 0
    %720 = vmatpush1.bf16.msra.mxu0 %v700
    %721 = vmatprep.subr.bf16.mxu0 0
    %722 = vmatpush1.bf16.msra.mxu0 %v701
    %723 = vmatprep.subr.bf16.mxu0 0
    %724 = vmatpush1.bf16.msra.mxu0 %v702
    %725 = vmatprep.subr.bf16.mxu0 0
    %726 = vmatpush1.bf16.msra.mxu0 %v703
    %727 = vmatprep.subr.bf16.mxu0 0
    %728 = vmatpush1.bf16.msra.mxu0 %v704
    %729 = vmatprep.subr.bf16.mxu0 0
    %730 = vmatpush1.bf16.msra.mxu0 0
    %731 = vmatprep.subr.bf16.mxu0 0
    %732 = vmatpush1.bf16.msra.mxu0 0
    %733 = vmatprep.subr.bf16.mxu0 0
    %734 = vmatpush1.bf16.msra.mxu0 0
    %735 = vmatprep.subr.bf16.mxu0 0
    %736 = vmatpush1.bf16.msra.mxu0 0
    %737 = vmatprep.subr.bf16.mxu0 0
    %738 = vmatpush1.bf16.msra.mxu0 0
    %739 = vmatprep.subr.bf16.mxu0 0
    %740 = vmatpush1.bf16.msra.mxu0 0
    %741 = vmatprep.subr.bf16.mxu0 0
    %742 = vmatpush1.bf16.msra.mxu0 0
    %743 = vmatprep.subr.bf16.mxu0 0
    %744 = vmatpush1.bf16.msra.mxu0 0
    %745 = vmatprep.mubr.bf16.mxu0 0
    %746 = vmatmul.mubr.bf16.gmra.mrb[0].mxu0 %v639
    %v747 = vpop.f32.mrb[0].mxu0
    %v748 = vadd.f32 %v663, %v747
    %v749 = vpop.f32.mrb[0].mxu0
    %v750 = vpop.f32.mrb[0].mxu0
    %v751 = vpop.f32.mrb[0].mxu0
    %752 = vdwg.mxu0
    %v753 = vmax.f32 %v748, 0.0
    %754 = vst [vmem:[#allocation8] sm:$0xf] %v753
    %755 = vst [vmem:[#allocation9 - $0x4] sm:$0xf0] %v753
    // Predicated region
    $region30: #{tpu_custom_call.1} parent=1 // pred_check
      _
    $region31: #{tpu_custom_call.1} parent=1 // pred_check_branch
      %757 = sbr.rel (0) target = $region33
    $region32: #{tpu_custom_call.1} parent=1 // pred_region
      %s759 = ssub.s32 64, 64
      %760 = vsyncadd [#allocation4], %s759
      %s762 = sshll.u32 [#allocation8], 4
      %s763 = int_to_ptr.vmem [resolvable:$true] %s762
      %765 = dma.vmem_to_hbm [thread:$0]  %s763, 64, %s4, [#allocation4]
    $region33: #{tpu_custom_call.1} parent=1 // pred_fallthru
      _
    // Predicated region
    $region34: #{tpu_custom_call.1} parent=1 // pred_check
      _
    $region35: #{tpu_custom_call.1} parent=1 // pred_check_branch
      %767 = sbr.rel (0) target = $region37
    $region36: #{tpu_custom_call.1} parent=1 // pred_region
      %s769 = ssub.s32 64, 64
      %770 = vsyncadd [#allocation10], %s769
      %s772 = sshll.u32 [#allocation9], 4
      %s773 = int_to_ptr.vmem [resolvable:$true] %s772
      %775 = dma.vmem_to_hbm [thread:$0]  %s773, 64, %s5, [#allocation10]
    $region37: #{tpu_custom_call.1} parent=1 // pred_fallthru
      _
    // Predicated region
    $region38: #{tpu_custom_call.1} parent=1 // pred_check
      _
    $region39: #{tpu_custom_call.1} parent=1 // pred_check_branch
      %777 = sbr.rel (0) target = $region41
    $region40: #{tpu_custom_call.1} parent=1 // pred_region
      %778 = dma.done [#allocation4], 64
    $region41: #{tpu_custom_call.1} parent=1 // pred_fallthru
      _
    // Predicated region
    $region42: #{tpu_custom_call.1} parent=1 // pred_check
      _
    $region43: #{tpu_custom_call.1} parent=1 // pred_check_branch
      %780 = sbr.rel (0) target = $region45
    $region44: #{tpu_custom_call.1} parent=1 // pred_region
      %781 = dma.done [#allocation10], 64
    $region45: #{tpu_custom_call.1} parent=1 // pred_fallthru
      _
    %782 = vsyncpa [#allocation3], 1
    %783 = vsyncpa [#allocation6], 1
    %784 = vsyncpa [#allocation4], 1
    %785 = vsyncpa [#allocation10], 1

</llo_original>
